<compile_context>
chip_gen: v6e
topology: v6e:2x2x1
jax: 0.10.0
libtpu: 0.0.40
codegen_flags: <defaults>
</compile_context>

<pallas_src>
import functools

import jax
import jax.numpy as jnp
from jax import lax
from jax.experimental import pallas as pl
from jax.experimental.pallas import tpu as pltpu

EPS = 1e-5
NEG_SLOPE = 0.2


def _round_up(v, m):
    return -(-v // m) * m


def _vmem_cap_bytes():
    """Conservative per-kernel VMEM budget for the current TPU generation."""
    try:
        phys = int(pltpu.get_tpu_info().vmem_capacity_bytes)
    except Exception:
        phys = 64 << 20  # assume the tightest budget (v7x) if query fails
    # Leave ~28% headroom for compiler-internal scratch; never ask for >100MiB.
    return min(int(phys * 0.72), 100 << 20)


_VMEM_CAP = _vmem_cap_bytes()


def _unet_down_kernel(w_ref, p_ref, o_ref, *, tk, tco, n_k, n_co, resident,
                      p_true):
    """Grid = (batch, Cout tiles, K tiles).

    w_ref: resident -> (Cout, Kpad) bf16 full weight; else (tco, tk) bf16 tile
    p_ref: (1, tk, Ppad)  bf16 im2col patch tile for this batch element
    o_ref: (1, tco, Ppad) f32 output block (resident across the K axis; used
           directly as the accumulator, then normalized in place).
    """
    co = pl.program_id(1)
    ki = pl.program_id(2)

    if resident:
        if n_co == 1 and n_k == 1:
            w_tile = w_ref[...]
        elif n_co == 1:
            c0 = pl.multiple_of(ki * tk, tk)
            w_tile = w_ref[:, pl.ds(c0, tk)]
        else:
            r0 = pl.multiple_of(co * tco, tco)
            c0 = pl.multiple_of(ki * tk, tk)
            w_tile = w_ref[pl.ds(r0, tco), pl.ds(c0, tk)]
    else:
        w_tile = w_ref[...]

    contrib = jnp.dot(w_tile, p_ref[0], preferred_element_type=jnp.float32)

    def _norm_lrelu(y):
        # InstanceNorm2d (affine=False, biased variance, eps=1e-5) per channel
        # row over the true P spatial positions; padded lane columns are zero
        # in the accumulated conv output and are masked out of the variance.
        inv_p = jnp.float32(1.0 / p_true)
        mean = jnp.sum(y, axis=1, keepdims=True) * inv_p
        col = lax.broadcasted_iota(jnp.int32, y.shape, 1)
        centered = jnp.where(col < p_true, y - mean, 0.0)
        var = jnp.sum(centered * centered, axis=1, keepdims=True) * inv_p
        y_norm = centered * lax.rsqrt(var + jnp.float32(EPS))
        # LeakyReLU(0.2) as a single max.
        return jnp.maximum(y_norm, jnp.float32(NEG_SLOPE) * y_norm)

    if n_k == 1:
        o_ref[0] = _norm_lrelu(contrib).astype(o_ref.dtype)
    else:
        @pl.when(ki == 0)
        def _():
            o_ref[0] = contrib

        @pl.when(ki > 0)
        def _():
            o_ref[0] += contrib

        @pl.when(ki == n_k - 1)
        def _():
            o_ref[0] = _norm_lrelu(o_ref[0]).astype(o_ref.dtype)


def _im2col_kp(x, kernel=4, stride=2):
    """x: (N, C, H, W) -> patches (N, C*k*k, Hout*Wout), K-major layout matching
    the OIHW weight flattened as (Cout, Cin*k*k)."""
    n, c, h, w = x.shape
    h_out = (h - kernel) // stride + 1
    w_out = (w - kernel) // stride + 1
    cols = []
    for i in range(kernel):
        for j in range(kernel):
            cols.append(
                x[:, :, i:i + stride * h_out:stride, j:j + stride * w_out:stride]
            )  # (N, C, Hout, Wout)
    patches = jnp.stack(cols, axis=2)  # (N, C, k*k, Hout, Wout)
    patches = patches.reshape(n, c * kernel * kernel, h_out * w_out)
    return patches, h_out, w_out


def _plan(c_out, k, p_pad, cap):
    """Choose (tco, n_co, tk, k_pad, weight_resident, vmem_need_bytes)."""
    if c_out > 256 and c_out % 256 == 0:
        tco = 256
    else:
        tco = c_out
    n_co = c_out // tco

    headroom = 6 << 20
    out_blk = 2 * _round_up(tco, 8) * p_pad * 4          # f32, double buffered

    def patch_blk(tk):                                   # bf16 tile is (16,128)
        return 2 * _round_up(tk, 16) * p_pad * 2

    def w_resident(k_pad):
        return 2 * _round_up(c_out, 16) * k_pad * 2

    def w_stream(tk):
        return 2 * _round_up(tco, 16) * tk * 2

    # 1) weight resident, single K step (no K padding needed).
    need = out_blk + w_resident(k) + patch_blk(k)
    if need + headroom <= cap:
        return tco, n_co, k, k, True, need
    # 2) weight resident, K tiled (pad K to a multiple of tk).
    for tk in (2048, 1024, 512, 256, 128):
        k_pad = _round_up(k, tk)
        need = out_blk + w_resident(k_pad) + patch_blk(tk)
        if need + headroom <= cap:
            return tco, n_co, tk, k_pad, True, need
    # 3) streamed weight tiles.
    for tk in (2048, 1024, 512, 256, 128):
        k_pad = _round_up(k, tk)
        need = out_blk + w_stream(tk) + patch_blk(tk)
        if need + headroom <= cap:
            return tco, n_co, tk, k_pad, False, need
    # 4) last resort: smallest tiles (may spill, but never an unbounded block).
    k_pad = _round_up(k, 128)
    need = out_blk + w_stream(128) + patch_blk(128)
    return tco, n_co, 128, k_pad, False, need


@functools.partial(jax.jit, static_argnames=("kernel", "stride"))
def unet_down(x, weight, kernel=4, stride=2):
    """x: (N, Cin, H, W) f32; weight: (Cout, Cin, 4, 4) f32 (PyTorch OIHW).

    Returns (N, Cout, Hout, Wout) f32.
    """
    n, c_in, h, w = x.shape
    c_out = weight.shape[0]
    k = c_in * kernel * kernel

    # bf16 operands for the MXU (cast before im2col to halve patch bytes);
    # accumulation and statistics stay f32 in-kernel.
    patches, h_out, w_out = _im2col_kp(x.astype(jnp.bfloat16), kernel, stride)
    p = h_out * w_out
    p_pad = _round_up(p, 128)

    tco, n_co, tk, k_pad, resident, need = _plan(c_out, k, p_pad, _VMEM_CAP)
    n_k = k_pad // tk

    # Zero-pad K (contraction) and P (lane) so every block is full and lane
    # dense; zeros contribute nothing to the conv sum and the epilogue masks
    # the pad columns out of the statistics.
    patches = jnp.pad(patches, ((0, 0), (0, k_pad - k), (0, p_pad - p)))
    w_mat = weight.reshape(c_out, k).astype(jnp.bfloat16)
    if k_pad != k:
        w_mat = jnp.pad(w_mat, ((0, 0), (0, k_pad - k)))

    if resident:
        # Whole weight stays in VMEM (constant index map => fetched once),
        # sliced in-kernel per (Cout tile, K tile).
        w_spec = pl.BlockSpec((c_out, k_pad), lambda b, co, ki: (0, 0))
    else:
        w_spec = pl.BlockSpec((tco, tk), lambda b, co, ki: (co, ki))

    kernel_fn = functools.partial(
        _unet_down_kernel, tk=tk, tco=tco, n_k=n_k, n_co=n_co,
        resident=resident, p_true=p)

    vmem_limit = int(min(max(need + (4 << 20), 16 << 20), _VMEM_CAP))

    out = pl.pallas_call(
        kernel_fn,
        out_shape=jax.ShapeDtypeStruct((n, c_out, p_pad), jnp.float32),
        grid_spec=pltpu.PrefetchScalarGridSpec(
            num_scalar_prefetch=0,
            grid=(n, n_co, n_k),
            in_specs=[
                w_spec,
                pl.BlockSpec((1, tk, p_pad), lambda b, co, ki: (b, ki, 0)),
            ],
            out_specs=pl.BlockSpec((1, tco, p_pad), lambda b, co, ki: (b, co, 0)),
        ),
        compiler_params=pltpu.CompilerParams(
            dimension_semantics=("parallel", "parallel", "arbitrary"),
            vmem_limit_bytes=vmem_limit,
        ),
    )(w_mat, patches)                                    # (N, Cout, Ppad) f32

    return out[:, :, :p].reshape(n, c_out, h_out, w_out)


def _reference(x, weight):
    """Pure-JAX f32 reference (Conv VALID s=2 -> InstanceNorm -> LeakyReLU)."""
    y = lax.conv_general_dilated(
        x, weight, window_strides=(2, 2), padding="VALID",
        dimension_numbers=("NCHW", "OIHW", "NCHW"),
    )
    mean = jnp.mean(y, axis=(2, 3), keepdims=True)
    var = jnp.mean((y - mean) ** 2, axis=(2, 3), keepdims=True)
    yn = (y - mean) * lax.rsqrt(var + EPS)
    return jnp.where(yn >= 0, yn, NEG_SLOPE * yn)


if __name__ == "__main__":
    key = jax.random.PRNGKey(0)
    kx, kw = jax.random.split(key)

    N, C_IN, C_OUT, H, W = 2, 4, 8, 16, 16
    x = jax.random.normal(kx, (N, C_IN, H, W), dtype=jnp.float32)
    # Deterministic synthetic conv weight (PyTorch layout: (Cout, Cin, 4, 4)).
    weight = 0.1 * jax.random.normal(kw, (C_OUT, C_IN, 4, 4), dtype=jnp.float32)

    out = jax.block_until_ready(unet_down(x, weight))
    ref = jax.block_until_ready(_reference(x, weight))

    assert out.shape == ref.shape == (N, C_OUT, 7, 7), out.shape
    # bf16 matmul operands with f32 accumulation: tolerance covers bf16 input
    # rounding (~1e-2 on a unit-variance normalized output).
    max_err = float(jnp.max(jnp.abs(out - ref)))
    assert max_err < 5e-2, max_err

    print("KERNEL_OK")
</pallas_src>

<mosaic_0001>
module attributes {stable_mosaic.version = 11 : i64} {
  func.func @_unet_down_kernel(%arg0: i32, %arg1: i32, %arg2: i32, %arg3: memref<8x64xbf16, #tpu.memory_space<vmem>>, %arg4: memref<1x64x128xbf16, #tpu.memory_space<vmem>>, %arg5: memref<1x8x128xf32, #tpu.memory_space<vmem>>) attributes {dimension_semantics = [#tpu.dimension_semantics<parallel>, #tpu.dimension_semantics<parallel>, #tpu.dimension_semantics<arbitrary>], iteration_bounds = array<i64: 2, 1, 1>, scalar_prefetch = 0 : i64, scratch_operands = 0 : i64, tpu.core_type = #tpu.core_type<tc>, window_params = [{pipeline_mode = #tpu.pipeline_mode<synchronous>, transform_indices = @transform_0, window_bounds = array<i64: 8, 64>}, {transform_indices = @transform_1, window_bounds = array<i64: 1, 64, 128>}, {transform_indices = @transform_2, window_bounds = array<i64: 1, 8, 128>}]} {
    %c0 = arith.constant 0 : index
    %c0_0 = arith.constant 0 : index
    %0 = vector.load %arg3[%c0, %c0_0] : memref<8x64xbf16, #tpu.memory_space<vmem>>, vector<8x64xbf16>
    %c0_1 = arith.constant 0 : index
    %c0_2 = arith.constant 0 : index
    %c0_3 = arith.constant 0 : index
    %1 = vector.load %arg4[%c0_1, %c0_2, %c0_3] : memref<1x64x128xbf16, #tpu.memory_space<vmem>>, vector<1x64x128xbf16>
    %2 = vector.shape_cast %1 : vector<1x64x128xbf16> to vector<64x128xbf16>
    %cst = arith.constant dense<0.000000e+00> : vector<8x128xf32>
    %3 = tpu.matmul %0, %2, %cst {dimension_numbers = #tpu.dot_dimension_numbers<[1], [0], [0], [1], [0, 0, 1, 1], [], []>} : vector<8x64xbf16>, vector<64x128xbf16>, vector<8x128xf32> -> vector<8x128xf32>
    %cst_4 = arith.constant dense<0.000000e+00> : vector<8xf32>
    %4 = vector.multi_reduction <add>, %3, %cst_4 [1] : vector<8x128xf32> to vector<8xf32>
    %5 = vector.shape_cast %4 : vector<8xf32> to vector<8x1xf32>
    %cst_5 = arith.constant 0.0204081628 : f32
    %6 = vector.broadcast %cst_5 : f32 to vector<8x1xf32>
    %7 = arith.mulf %5, %6 : vector<8x1xf32>
    %8 = tpu.iota {dimensions = array<i32: 1>} : vector<8x128xi32>
    %c49_i32 = arith.constant 49 : i32
    %9 = vector.broadcast %c49_i32 : i32 to vector<8x128xi32>
    %10 = arith.cmpi slt, %8, %9 : vector<8x128xi32>
    %11 = vector.broadcast %7 : vector<8x1xf32> to vector<8x128xf32>
    %12 = arith.subf %3, %11 : vector<8x128xf32>
    %cst_6 = arith.constant 0.000000e+00 : f32
    %13 = vector.broadcast %cst_6 : f32 to vector<8x128xf32>
    %14 = arith.select %10, %12, %13 : vector<8x128xi1>, vector<8x128xf32>
    %15 = arith.mulf %14, %14 : vector<8x128xf32>
    %cst_7 = arith.constant dense<0.000000e+00> : vector<8xf32>
    %16 = vector.multi_reduction <add>, %15, %cst_7 [1] : vector<8x128xf32> to vector<8xf32>
    %17 = vector.shape_cast %16 : vector<8xf32> to vector<8x1xf32>
    %cst_8 = arith.constant 0.0204081628 : f32
    %18 = vector.broadcast %cst_8 : f32 to vector<8x1xf32>
    %19 = arith.mulf %17, %18 : vector<8x1xf32>
    %cst_9 = arith.constant 9.99999974E-6 : f32
    %20 = vector.broadcast %cst_9 : f32 to vector<8x1xf32>
    %21 = arith.addf %19, %20 : vector<8x1xf32>
    %22 = math.rsqrt %21 : vector<8x1xf32>
    %23 = vector.broadcast %22 : vector<8x1xf32> to vector<8x128xf32>
    %24 = arith.mulf %14, %23 : vector<8x128xf32>
    %cst_10 = arith.constant 2.000000e-01 : f32
    %25 = vector.broadcast %cst_10 : f32 to vector<8x128xf32>
    %26 = arith.mulf %25, %24 : vector<8x128xf32>
    %27 = arith.maximumf %24, %26 : vector<8x128xf32>
    %c0_11 = arith.constant 0 : index
    %c0_12 = arith.constant 0 : index
    %c0_13 = arith.constant 0 : index
    %28 = vector.load %arg5[%c0_11, %c0_12, %c0_13] : memref<1x8x128xf32, #tpu.memory_space<vmem>>, vector<1x8x128xf32>
    %29 = vector.shape_cast %28 : vector<1x8x128xf32> to vector<8x128xf32>
    %30 = vector.shape_cast %27 : vector<8x128xf32> to vector<1x8x128xf32>
    tpu.vector_store %arg5[%c0_11, %c0_12, %c0_13], %30 {strides = array<i32>} : memref<1x8x128xf32, #tpu.memory_space<vmem>>, vector<1x8x128xf32>,
    return
  }
  func.func @transform_0(%arg0: i32, %arg1: i32, %arg2: i32) -> (i32, i32) {
    %c0_i32 = arith.constant 0 : i32
    %c0_i32_0 = arith.constant 0 : i32
    %c0_i32_1 = arith.constant 0 : i32
    return %c0_i32, %c0_i32_0 : i32, i32
  }
  func.func @transform_1(%arg0: i32, %arg1: i32, %arg2: i32) -> (i32, i32, i32) {
    %c0_i32 = arith.constant 0 : i32
    %c0_i32_0 = arith.constant 0 : i32
    return %arg0, %arg2, %c0_i32 : i32, i32, i32
  }
  func.func @transform_2(%arg0: i32, %arg1: i32, %arg2: i32) -> (i32, i32, i32) {
    %c0_i32 = arith.constant 0 : i32
    %c0_i32_0 = arith.constant 0 : i32
    return %arg0, %arg1, %c0_i32 : i32, i32, i32
  }
}

</mosaic_0001>

<llo_original>
// kernel: unet_down.1
$region0: #{unet_down.1}
  #allocation0 [shape = 'u32[]', space=smem, size = 0x4, offset = 0x4, fixed_abs, tag = 'smem constant byte address 0x4 - core index']
  #allocation1 [shape = 'u32[144,128]{1,0:T(1,128)}', space=vmem, size = 0x12000, scoped, tag = 'internal scratch']
  %s0 = inlined_call_operand.vmem [shape: bf16[8,64], index: 0, kind: input, shape index: {}]
  %s1 = inlined_call_operand.vmem [shape: bf16[2,64,128], index: 1, kind: input, shape index: {}]
  %s2 = inlined_call_operand.vmem [shape: f32[2,8,128], index: 2, kind: output, shape index: {}]
  %s3 = sld [smem:[#allocation0]]
  $region41: #{unet_down.1} parent=0
    _
  %s5 = ssub.s32 1, %s3
  %s6 = scalar_select 0, %s5, %s3
  loop: start=0, step=1, limit=4
  $region2: #{unet_down.1} parent=0 // loop_pre_header
    _
  $region3: #{unet_down.1} parent=0 // loop_header
    %s8 = sphi 0, %s12
    %p9 = scmp.ge.s32.totalorder %s8, 4
    %s15 = sphi 0, %s34
    %s16 = sphi 0, %s30
    %s17 = sphi 0, %s26
    %s18 = sphi 0, %s15
    %s19 = sphi 0, %s16
    %s20 = sphi 0, %s17
    %s21 = sphi 0, %s18
    %s22 = sphi 0, %s19
    %s23 = sphi 0, %s20
    %s35 = sphi 0, %s35
    %s37 = sphi 0, %s35
    %s38 = sphi 0, %s37
    %s52 = sphi 0, %s38
    %s60 = sphi 0, %s62
    %s63 = sphi 0, %s60
    %s64 = sphi 0, %s63
    %s80 = sphi 0, %s64
    %s88 = sphi 0, %s90
    %s91 = sphi 0, %s88
    %s92 = sphi 0, %s91
    %s108 = sphi 0, %s92
  $region4: #{unet_down.1} parent=0 // loop_header_branch
    %11 = sbr.rel (%p9) target = $region8
  $region5: #{unet_down.1} parent=0 // loop_body
    %s13 = ssub.s32 %s8, 1
    %s14 = ssub.s32 %s8, 2
    %s24 = sadd.s32 1, %s17
    %p25 = scmp.ge.s32.totalorder %s24, 1
    %s26 = scalar_select %p25, 0, %s24
    %s27 = sadd.s32 1, %s16
    %s28 = scalar_select %p25, %s27, %s16
    %p29 = scmp.ge.s32.totalorder %s28, 1
    %s30 = scalar_select %p29, 0, %s28
    %s31 = sadd.s32 1, %s15
    %s32 = scalar_select %p29, %s31, %s15
    %p33 = scmp.ge.s32.totalorder %s32, 2
    %s34 = scalar_select %p33, 0, %s32
    %s36 = sadd.s32 %s35, 1
    %p39 = scmp.eq.s32.totalorder %s8, 1
    %p40 = scmp.ne.s32.totalorder %s35, %s37
    %p41 = scmp.eq.s32.totalorder %s8, 0
    %p42 = por %p40, %p41
    %p43 = scmp.ne.s32.totalorder %s35, %s37
    %p44 = scmp.eq.s32.totalorder %s13, 1
    %p45 = por %p43, %p44
    %p46 = scmp.ne.s32.totalorder %s37, %s38
    %p47 = scmp.eq.s32.totalorder %s13, 0
    %p48 = por %p46, %p47
    %p49 = scmp.ne.s32.totalorder %s37, %s38
    %p50 = scmp.eq.s32.totalorder %s14, 1
    %p51 = por %p49, %p50
    %p53 = scmp.ne.s32.totalorder %s38, %s52
    %p54 = scmp.eq.s32.totalorder %s14, 0
    %p55 = por %p53, %p54
    %s56 = ssub.s32 %s15, %s34
    %s57 = ssub.s32 %s17, %s26
    %s58 = sor.u32 %s56, %s57
    %p59 = scmp.eq.s32.totalorder %s58, 0
    %s61 = sadd.s32 %s60, 1
    %s62 = scalar_select %p59, %s60, %s61
    %p65 = pneg %p59
    %p66 = scmp.eq.s32.totalorder %s8, 1
    %p67 = por %p65, %p66
    %p68 = scmp.ne.s32.totalorder %s60, %s63
    %p69 = scmp.eq.s32.totalorder %s8, 0
    %p70 = por %p68, %p69
    %p71 = scmp.ne.s32.totalorder %s60, %s63
    %p72 = scmp.eq.s32.totalorder %s13, 1
    %p73 = por %p71, %p72
    %p74 = scmp.ne.s32.totalorder %s63, %s64
    %p75 = scmp.eq.s32.totalorder %s13, 0
    %p76 = por %p74, %p75
    %p77 = scmp.ne.s32.totalorder %s63, %s64
    %p78 = scmp.eq.s32.totalorder %s14, 1
    %p79 = por %p77, %p78
    %p81 = scmp.ne.s32.totalorder %s64, %s80
    %p82 = scmp.eq.s32.totalorder %s14, 0
    %p83 = por %p81, %p82
    %s84 = ssub.s32 %s15, %s34
    %s85 = ssub.s32 %s16, %s30
    %s86 = sor.u32 %s84, %s85
    %p87 = scmp.eq.s32.totalorder %s86, 0
    %s89 = sadd.s32 %s88, 1
    %s90 = scalar_select %p87, %s88, %s89
    %p93 = pneg %p87
    %p94 = scmp.eq.s32.totalorder %s8, 1
    %p95 = por %p93, %p94
    %p96 = scmp.ne.s32.totalorder %s88, %s91
    %p97 = scmp.eq.s32.totalorder %s8, 0
    %p98 = por %p96, %p97
    %p99 = scmp.ne.s32.totalorder %s88, %s91
    %p100 = scmp.eq.s32.totalorder %s13, 1
    %p101 = por %p99, %p100
    %p102 = scmp.ne.s32.totalorder %s91, %s92
    %p103 = scmp.eq.s32.totalorder %s13, 0
    %p104 = por %p102, %p103
    %p105 = scmp.ne.s32.totalorder %s91, %s92
    %p106 = scmp.eq.s32.totalorder %s14, 1
    %p107 = por %p105, %p106
    %p109 = scmp.ne.s32.totalorder %s92, %s108
    %p110 = scmp.eq.s32.totalorder %s14, 0
    %p111 = por %p109, %p110
    %p112 = scmp.le.s32.totalorder 1, %s8
    %p113 = scmp.lt.s32.totalorder %s8, 3
    %p114 = pnand %p112, %p113
    %p115 = pneg %p114
    // Predicated region
    $region9: #{unet_down.1} parent=5 // pred_check
      _
    $region10: #{unet_down.1} parent=5 // pred_check_branch
      %117 = sbr.rel (%p114) target = $region12
    $region11: #{unet_down.1} parent=5 // pred_region
      %s118 = ssub.s32 %s8, 1
      // Predicated region
      $region13: #{unet_down.1} parent=11 // pred_check
        %p119 = pneg %p48
      $region14: #{unet_down.1} parent=11 // pred_check_branch
        %121 = sbr.rel (%p119) target = $region16
      $region15: #{unet_down.1} parent=11 // pred_region
        _
      $region16: #{unet_down.1} parent=11 // pred_fallthru
        _
    $region12: #{unet_down.1} parent=5 // pred_fallthru
      _
    %p122 = scmp.lt.s32.totalorder %s8, 2
    // Predicated region
    $region17: #{unet_down.1} parent=5 // pred_check
      %p123 = pneg %p122
    $region18: #{unet_down.1} parent=5 // pred_check_branch
      %125 = sbr.rel (%p123) target = $region20
    $region19: #{unet_down.1} parent=5 // pred_region
      // Predicated region
      $region21: #{unet_down.1} parent=19 // pred_check
        %p126 = pneg %p70
      $region22: #{unet_down.1} parent=19 // pred_check_branch
        %128 = sbr.rel (%p126) target = $region24
      $region23: #{unet_down.1} parent=19 // pred_region
        %s129 = smul.u32 8, %s17
        %p130 = scmp.lt.s32.totalorder %s15, 1
        %s131 = scalar_select %p130, %s15, 1
        %p132 = scmp.lt.s32.totalorder %s129, 7
        %s133 = scalar_select %p132, %s129, 7
        %s134 = smul.addr %s131, 8
        %s135 = sadd.s32 %s133, %s134
        %s136 = smul.addr %s135, 4
        %s137 = scalar_lea.vmem %s1, %s136
        %s138 = smul.u32 8, %s17
      $region24: #{unet_down.1} parent=19 // pred_fallthru
        _
    $region20: #{unet_down.1} parent=5 // pred_fallthru
      _
    %p139 = scmp.le.s32.totalorder 1, %s8
    %p140 = scmp.lt.s32.totalorder %s8, 3
    %p141 = pnand %p139, %p140
    %p142 = pneg %p141
    // Predicated region
    $region25: #{unet_down.1} parent=5 // pred_check
      _
    $region26: #{unet_down.1} parent=5 // pred_check_branch
      %144 = sbr.rel (%p141) target = $region28
    $region27: #{unet_down.1} parent=5 // pred_region
      %s145 = ssub.s32 %s8, 1
      %p146 = pneg %p48
      %p147 = pneg %p45
      %s148 = smul.u32 8, %s20
      %p149 = scmp.lt.s32.totalorder %s18, 1
      %s150 = scalar_select %p149, %s18, 1
      %p151 = scmp.lt.s32.totalorder %s148, 7
      %s152 = scalar_select %p151, %s148, 7
      %s153 = smul.addr %s150, 8
      %s154 = sadd.s32 %s152, %s153
      %s155 = smul.addr %s154, 4
      %s156 = scalar_lea.vmem %s1, %s155
      %p157 = pneg %p76
      %p158 = pneg %p73
      %p159 = pneg %p104
      %p160 = pneg %p101
      %p161 = scmp.lt.s32.totalorder %s18, 1
      %s162 = scalar_select %p161, %s18, 1
      %p163 = scmp.lt.s32.totalorder %s19, 0
      %s164 = scalar_select %p163, %s19, 0
      %s165 = sadd.s32 %s164, %s162
      %s166 = smul.addr %s165, 8
      %s167 = scalar_lea.vmem %s2, %s166
      %s168 = smul.u32 8, %s20
      %p169 = scmp.lt.s32.totalorder %s18, 1
      %s170 = scalar_select %p169, %s18, 1
      %p171 = scmp.lt.s32.totalorder %s168, 7
      %s172 = scalar_select %p171, %s168, 7
      %s173 = smul.addr %s170, 8
      %s174 = sadd.s32 %s172, %s173
      %s175 = smul.addr %s174, 4
      %s176 = scalar_lea.vmem %s1, %s175
      %s177 = smul.u32 8, %s20
      %p178 = scmp.lt.s32.totalorder %s18, 1
      %s179 = scalar_select %p178, %s18, 1
      %p180 = scmp.lt.s32.totalorder %s19, 0
      %s181 = scalar_select %p180, %s19, 0
      %s182 = sadd.s32 %s181, %s179
      %s183 = smul.addr %s182, 8
      %s184 = scalar_lea.vmem %s2, %s183
      %v186 = vld [vmem:[%s0] sm:$0xf]
      %v187 = vld [vmem:[%s176] sm:$0xf]
      %v188 = vld [vmem:[%s176 + $0x4] sm:$0xf]
      %v189 = vld [vmem:[%s176 + $0x8] sm:$0xf]
      %v190 = vld [vmem:[%s176 + $0xc] sm:$0xf]
      %v191 = vld [vmem:[%s176 + $0x10] sm:$0xf]
      %v192 = vld [vmem:[%s176 + $0x14] sm:$0xf]
      %v193 = vld [vmem:[%s176 + $0x18] sm:$0xf]
      %v194 = vld [vmem:[%s176 + $0x1c] sm:$0xf]
      %v203 = vunpack.c.l.b16 %v187
      %v204 = vunpack.c.l.b16 %v188
      %v205 = vunpack.c.l.b16 %v189
      %v206 = vunpack.c.l.b16 %v190
      %v207 = vunpack.c.l.b16 %v191
      %v208 = vunpack.c.l.b16 %v192
      %v209 = vunpack.c.l.b16 %v193
      %v210 = vunpack.c.l.b16 %v194
      %v211 = vpack.c.b16 %v204, %v203
      %v212 = vpack.c.b16 %v206, %v205
      %v213 = vpack.c.b16 %v208, %v207
      %v214 = vpack.c.b16 %v210, %v209
      %vm219 = vcmask 523264
      %v221 = vsel %vm219, %v186, 0
      %223 = vmatprep.subr.bf16.mxu0 0
      %224 = vmatpush1.bf16.msra.mxu0 0
      %225 = vmatprep.subr.bf16.mxu0 0
      %226 = vmatpush1.bf16.msra.mxu0 0
      %227 = vmatprep.subr.bf16.mxu0 0
      %228 = vmatpush1.bf16.msra.mxu0 0
      %229 = vmatprep.subr.bf16.mxu0 0
      %230 = vmatpush1.bf16.msra.mxu0 0
      %231 = vmatprep.subr.bf16.mxu0 0
      %232 = vmatpush1.bf16.msra.mxu0 %v214
      %233 = vmatprep.subr.bf16.mxu0 0
      %234 = vmatpush1.bf16.msra.mxu0 %v213
      %235 = vmatprep.subr.bf16.mxu0 0
      %236 = vmatpush1.bf16.msra.mxu0 %v212
      %237 = vmatprep.subr.bf16.mxu0 0
      %238 = vmatpush1.bf16.msra.mxu0 %v211
      %239 = vmatprep.subr.bf16.mxu0 0
      %240 = vmatpush2.bf16.msra.mxu0 0
      %241 = vmatprep.subr.bf16.mxu0 0
      %242 = vmatpush2.bf16.msra.mxu0 0
      %243 = vmatprep.subr.bf16.mxu0 0
      %244 = vmatpush2.bf16.msra.mxu0 0
      %245 = vmatprep.subr.bf16.mxu0 0
      %246 = vmatpush2.bf16.msra.mxu0 0
      %247 = vmatprep.subr.bf16.mxu0 0
      %248 = vmatpush2.bf16.msra.mxu0 0
      %249 = vmatprep.subr.bf16.mxu0 0
      %250 = vmatpush2.bf16.msra.mxu0 0
      %251 = vmatprep.subr.bf16.mxu0 0
      %252 = vmatpush2.bf16.msra.mxu0 0
      %253 = vmatprep.subr.bf16.mxu0 0
      %254 = vmatpush2.bf16.msra.mxu0 0
      %255 = vmatprep.mubr.bf16.mxu0 0
      %256 = vmatmul.mubr.bf16.gmra.mxu0 %v221
      %v257 = vpop.f32.mrf.mxu0
      %v258 = vadd.f32 0.0, %v257
      %v259 = vpop.f32.mrf.mxu0
      %v260 = vpop.f32.mrf.mxu0
      %v261 = vpop.f32.mrf.mxu0
      %262 = vdwg.mxu0
      %263 = vadd.xlane.f32.xlu0 %v258
      %v264 = vpop.xlane.xlu0 %263
      %v265 = vmul.f32 %v264, 0.020408163
      %v266 = vlaneseq
      %v267 = vand.u32 %v266, 127
      %vm268 = vcmp.lt.s32.totalorder %v267, 49
      %v269 = vsub.f32 %v258, %v265
      %v270 = vsel %vm268, %v269, 0.0
      %v271 = vmul.f32 %v270, %v270
      %272 = vadd.xlane.f32.xlu0 %v271
      %v273 = vpop.xlane.xlu0 %272
      %v274 = vmul.f32 %v273, 0.020408163
      %v275 = vadd.f32 %v274, 1e-05
      %v276 = vrsqrt.pop %v275
      %v277 = vmul.f32 %v270, %v276
      %v278 = vmul.f32 %v277, 0.2
      %v279 = vmax.f32 %v277, %v278
      %280 = vst [vmem:[%s184] sm:$0xff] %v279
      %p281 = scmp.lt.s32.totalorder %s18, 1
      %s282 = scalar_select %p281, %s18, 1
      %p283 = scmp.lt.s32.totalorder %s19, 0
      %s284 = scalar_select %p283, %s19, 0
      %s285 = sadd.s32 %s284, %s282
      %s286 = smul.addr %s285, 8
      %s287 = scalar_lea.vmem %s2, %s286
      // Predicated region
      $region29: #{unet_down.1} parent=27 // pred_check
        %p288 = pneg %p101
      $region30: #{unet_down.1} parent=27 // pred_check_branch
        %290 = sbr.rel (%p288) target = $region32
      $region31: #{unet_down.1} parent=27 // pred_region
        _
      $region32: #{unet_down.1} parent=27 // pred_fallthru
        _
    $region28: #{unet_down.1} parent=5 // pred_fallthru
      _
    %p291 = scmp.le.s32.totalorder 2, %s8
    // Predicated region
    $region33: #{unet_down.1} parent=5 // pred_check
      %p292 = pneg %p291
    $region34: #{unet_down.1} parent=5 // pred_check_branch
      %294 = sbr.rel (%p292) target = $region36
    $region35: #{unet_down.1} parent=5 // pred_region
      %s295 = ssub.s32 %s8, 2
      // Predicated region
      $region37: #{unet_down.1} parent=35 // pred_check
        %p296 = pneg %p107
      $region38: #{unet_down.1} parent=35 // pred_check_branch
        %298 = sbr.rel (%p296) target = $region40
      $region39: #{unet_down.1} parent=35 // pred_region
        %p299 = scmp.lt.s32.totalorder %s21, 1
        %s300 = scalar_select %p299, %s21, 1
        %p301 = scmp.lt.s32.totalorder %s22, 0
        %s302 = scalar_select %p301, %s22, 0
        %s303 = sadd.s32 %s302, %s300
        %s304 = smul.addr %s303, 8
        %s305 = scalar_lea.vmem %s2, %s304
      $region40: #{unet_down.1} parent=35 // pred_fallthru
        _
    $region36: #{unet_down.1} parent=5 // pred_fallthru
      _
  $region6: #{unet_down.1} parent=0 // loop_footer
    %s12 = sadd.s32 1, %s8
  $region7: #{unet_down.1} parent=0 // loop_footer_branch
    %7 = sbr.rel target = $region3
  $region8: #{unet_down.1} parent=0 // loop_exit
    _

</llo_original>
